<compile_context>
chip_gen: v7x
topology: tpu7x:2x2x1
jax: 0.10.0
libtpu: 0.0.40
codegen_flags: <defaults>
</compile_context>

<pallas_src>
import jax
import jax.numpy as jnp
from jax.experimental import pallas as pl
from jax.experimental.pallas import tpu as pltpu

H1, H2 = 400, 200          # logical hidden sizes (PyTorch module)
H1P, H2P = 512, 256        # lane/MXU-aligned padded hidden sizes
_MAX_TILE_B = 1024         # keeps per-step VMEM well under v5e's 16 MiB default


def _critic_kernel(x_ref, w_in_ref, w2_ref, w3_ref, o_ref):
    # One fused small-K MXU pass replaces {states@W1 + b1, actions@W2b + b2}:
    # cols [0:H1P) are the layer-1 pre-activation, cols [H1P:) are the
    # action/bias contribution to layer 2 (plus a constant-1 channel at the
    # last column that later carries b3).
    x = x_ref[...].astype(jnp.bfloat16)                        # (TILE_B, S+A+1)
    pre = jnp.dot(x, w_in_ref[...],
                  preferred_element_type=jnp.float32)          # (TILE_B, 768)

    h1 = jnp.maximum(pre[:, :H1P], 0.0).astype(jnp.bfloat16)   # layer-1 ReLU
    h2 = jnp.dot(h1, w2_ref[...],
                 preferred_element_type=jnp.float32) + pre[:, H1P:]
    h2 = jnp.maximum(h2, 0.0).astype(jnp.bfloat16)             # (TILE_B, H2P)

    # Value head as an NT (rhs-transposed) matmul -> lane-dense (8, TILE_B)
    # result; row 0 is q (b3 included via the constant-1 channel), rows 1..7
    # are zero padding so the MXU LHS is not a degenerate M=1 operand.
    q = jax.lax.dot_general(w3_ref[...], h2, (((1,), (1,)), ((), ())),
                            preferred_element_type=jnp.float32)
    o_ref[...] = q.astype(o_ref.dtype)


def _round_up(x, m):
    return ((x + m - 1) // m) * m


def _choose_tiling(B):
    """Pick (TILE_B, n_tiles): big tiles to amortize per-step overhead, lane
    (128) aligned when multi-tile, capped for v5e VMEM, and >=2 / even tiles
    when possible so v7x's two TensorCores both run."""
    if B <= 128:
        tile = _round_up(max(B, 1), 8)                     # one small tile
    elif B <= 2 * _MAX_TILE_B:
        tile = _round_up(pl.cdiv(B, 2), 128)               # exactly two tiles
    else:
        n = _round_up(pl.cdiv(B, _MAX_TILE_B), 2)          # even tile count
        tile = min(_MAX_TILE_B, _round_up(pl.cdiv(B, n), 128))
    n_tiles = pl.cdiv(B, tile)
    if n_tiles > 1 and n_tiles % 2:
        n_tiles += 1                                       # keep even for v7x
    return tile, n_tiles


def lunar_critic_forward(states, actions, prepared_params):
    """states: [B, S] f32, actions: [B, A] f32 -> [B, 1] f32."""
    B, S = states.shape
    A = actions.shape[1]
    w_in, w2a, w3r = prepared_params
    K = S + A + 1

    # Single merged, bias-carrying input: [states | actions | 1].
    x = jnp.concatenate(
        [states, actions, jnp.ones((B, 1), states.dtype)], axis=1)

    TILE_B, n_tiles = _choose_tiling(B)
    B_pad = n_tiles * TILE_B
    if B_pad != B:
        x = jnp.pad(x, ((0, B_pad - B), (0, 0)))

    resident = lambda arr: pl.BlockSpec(arr.shape, lambda i: (0, 0))

    out = pl.pallas_call(
        _critic_kernel,
        out_shape=jax.ShapeDtypeStruct((8, B_pad), jnp.float32),
        grid=(n_tiles,),
        in_specs=[
            pl.BlockSpec((TILE_B, K), lambda i: (i, 0)),   # merged input tile
            resident(w_in),                                # fused input weight
            resident(w2a),                                 # layer-2 weight
            resident(w3r),                                 # value-head row
        ],
        out_specs=pl.BlockSpec((8, TILE_B), lambda i: (0, i)),  # lane-dense
        compiler_params=pltpu.CompilerParams(
            dimension_semantics=("parallel",)),
    )(x, w_in, w2a, w3r)
    return out[0, :B].reshape(B, 1)


def init_params(key, state_dim, action_dim):
    """Raw f32 params matching nn.Linear default init, y = x @ W + b layout."""
    ks = jax.random.split(key, 6)

    def lin(kw, kb, fan_in, fan_out):
        bound = 1.0 / jnp.sqrt(jnp.float32(fan_in))
        w = jax.random.uniform(kw, (fan_in, fan_out), jnp.float32, -bound, bound)
        b = jax.random.uniform(kb, (1, fan_out), jnp.float32, -bound, bound)
        return w, b

    w1, b1 = lin(ks[0], ks[1], state_dim, H1)
    w2, b2 = lin(ks[2], ks[3], H1 + action_dim, H2)
    w3, b3 = lin(ks[4], ks[5], H2, 1)
    return (w1, b1, w2, b2, w3, b3)


def prepare_params(raw_params):
    """Build the three bf16 kernel weights.  Zero padding keeps the math exact
    up to the bf16 weight/bias rounding:
      w_in (S+A+1, H1P+H2P): block-diagonal fusion of W1 | W2_action with
        b1/b2 folded in via the constant-1 input column, plus a constant-1
        channel at padded h2 column H2P-1 (survives ReLU) that carries b3.
      w2a  (H1P, H2P):       W2 rows for h1 (column H2P-1 left zero).
      w3r  (8, H2P):         row 0 = [w3 | 0 ... 0 | b3], rows 1..7 zero.
    """
    w1, b1, w2, b2, w3, b3 = raw_params
    S = w1.shape[0]
    A = w2.shape[0] - H1
    K = S + A + 1

    w_in = jnp.zeros((K, H1P + H2P), jnp.float32)
    w_in = w_in.at[:S, :H1].set(w1)
    w_in = w_in.at[S + A, :H1].set(b1[0])
    w_in = w_in.at[S:S + A, H1P:H1P + H2].set(w2[H1:])
    w_in = w_in.at[S + A, H1P:H1P + H2].set(b2[0])
    w_in = w_in.at[S + A, H1P + H2P - 1].set(1.0)      # constant-1 channel
    w_in = w_in.astype(jnp.bfloat16)

    w2a = (jnp.zeros((H1P, H2P), jnp.float32)
           .at[:H1, :H2].set(w2[:H1]).astype(jnp.bfloat16))

    w3r = jnp.zeros((8, H2P), jnp.float32)
    w3r = w3r.at[0, :H2].set(w3[:, 0])
    w3r = w3r.at[0, H2P - 1].set(b3[0, 0])             # b3 via constant channel
    w3r = w3r.astype(jnp.bfloat16)
    return (w_in, w2a, w3r)


def reference_forward_f32(states, actions, raw_params):
    """Pure f32 reference: exact PyTorch-module semantics."""
    w1, b1, w2, b2, w3, b3 = raw_params
    h1 = jnp.maximum(states @ w1 + b1, 0.0)
    h2 = jnp.maximum(jnp.concatenate([h1, actions], axis=1) @ w2 + b2, 0.0)
    return h2 @ w3 + b3


def reference_forward_prepared(states, actions, prepared_params):
    """Reference replicating the kernel's mixed-precision math (bf16 weights,
    f32 accumulation, fused bias channels)."""
    w_in, w2a, w3r = prepared_params
    B = states.shape[0]
    x = jnp.concatenate(
        [states, actions, jnp.ones((B, 1), states.dtype)], axis=1)
    xb = x.astype(jnp.bfloat16)
    pre = jnp.dot(xb, w_in, preferred_element_type=jnp.float32)
    h1 = jnp.maximum(pre[:, :H1P], 0.0).astype(jnp.bfloat16)
    h2 = jnp.dot(h1, w2a, preferred_element_type=jnp.float32) + pre[:, H1P:]
    h2 = jnp.maximum(h2, 0.0).astype(jnp.bfloat16)
    return jnp.dot(h2, w3r[0:1].T, preferred_element_type=jnp.float32)


if __name__ == "__main__":
    state_dim, action_dim = 8, 2
    key = jax.random.PRNGKey(0)
    k_s, k_p = jax.random.split(key)
    raw_params = init_params(k_p, state_dim, action_dim)
    params = prepare_params(raw_params)

    ok = True
    for B in (2, 260):  # tiny single-tile case + multi-tile ragged-batch case
        ks, ka = jax.random.split(jax.random.fold_in(k_s, B))
        states = jax.random.normal(ks, (B, state_dim), jnp.float32)
        actions = jax.random.normal(ka, (B, action_dim), jnp.float32)

        out = jax.block_until_ready(lunar_critic_forward(states, actions, params))
        ref_mixed = reference_forward_prepared(states, actions, params)
        ref_f32 = reference_forward_f32(states, actions, raw_params)

        ok &= out.shape == (B, 1)
        ok &= bool(jnp.allclose(out, ref_mixed, atol=2e-3, rtol=2e-3))  # kernel == same-precision ref
        ok &= bool(jnp.allclose(out, ref_f32, atol=6e-2, rtol=6e-2))    # semantics match f32 module

    assert ok
    print("KERNEL_OK")
</pallas_src>

<mosaic_0001>
module attributes {stable_mosaic.version = 11 : i64} {
  func.func @_critic_kernel(%arg0: i32, %arg1: memref<8x11xf32, #tpu.memory_space<vmem>>, %arg2: memref<11x768xbf16, #tpu.memory_space<vmem>>, %arg3: memref<512x256xbf16, #tpu.memory_space<vmem>>, %arg4: memref<8x256xbf16, #tpu.memory_space<vmem>>, %arg5: memref<8x8xf32, #tpu.memory_space<vmem>>) attributes {dimension_semantics = [#tpu.dimension_semantics<parallel>], iteration_bounds = array<i64: 1>, scalar_prefetch = 0 : i64, scratch_operands = 0 : i64, tpu.core_type = #tpu.core_type<tc>, window_params = [{transform_indices = @transform_0, window_bounds = array<i64: 8, 11>}, {pipeline_mode = #tpu.pipeline_mode<synchronous>, transform_indices = @transform_1, window_bounds = array<i64: 11, 768>}, {pipeline_mode = #tpu.pipeline_mode<synchronous>, transform_indices = @transform_2, window_bounds = array<i64: 512, 256>}, {pipeline_mode = #tpu.pipeline_mode<synchronous>, transform_indices = @transform_3, window_bounds = array<i64: 8, 256>}, {transform_indices = @transform_4, window_bounds = array<i64: 8, 8>}]} {
    %c0 = arith.constant 0 : index
    %c0_0 = arith.constant 0 : index
    %0 = vector.load %arg1[%c0, %c0_0] : memref<8x11xf32, #tpu.memory_space<vmem>>, vector<8x11xf32>
    %1 = arith.truncf %0 : vector<8x11xf32> to vector<8x11xbf16>
    %c0_1 = arith.constant 0 : index
    %c0_2 = arith.constant 0 : index
    %2 = vector.load %arg2[%c0_1, %c0_2] : memref<11x768xbf16, #tpu.memory_space<vmem>>, vector<11x768xbf16>
    %cst = arith.constant dense<0.000000e+00> : vector<8x768xf32>
    %3 = tpu.matmul %1, %2, %cst {dimension_numbers = #tpu.dot_dimension_numbers<[1], [0], [0], [1], [0, 0, 1, 1], [], []>} : vector<8x11xbf16>, vector<11x768xbf16>, vector<8x768xf32> -> vector<8x768xf32>
    %4 = vector.extract_strided_slice %3 {offsets = [0, 0], sizes = [8, 512], strides = [1, 1]} : vector<8x768xf32> to vector<8x512xf32>
    %cst_3 = arith.constant 0.000000e+00 : f32
    %5 = vector.broadcast %cst_3 : f32 to vector<8x512xf32>
    %6 = arith.maximumf %4, %5 : vector<8x512xf32>
    %7 = arith.truncf %6 : vector<8x512xf32> to vector<8x512xbf16>
    %c0_4 = arith.constant 0 : index
    %c0_5 = arith.constant 0 : index
    %8 = vector.load %arg3[%c0_4, %c0_5] : memref<512x256xbf16, #tpu.memory_space<vmem>>, vector<512x256xbf16>
    %cst_6 = arith.constant dense<0.000000e+00> : vector<8x256xf32>
    %9 = tpu.matmul %7, %8, %cst_6 {dimension_numbers = #tpu.dot_dimension_numbers<[1], [0], [0], [1], [0, 0, 1, 1], [], []>} : vector<8x512xbf16>, vector<512x256xbf16>, vector<8x256xf32> -> vector<8x256xf32>
    %10 = vector.extract_strided_slice %3 {offsets = [0, 512], sizes = [8, 256], strides = [1, 1]} : vector<8x768xf32> to vector<8x256xf32>
    %11 = arith.addf %9, %10 : vector<8x256xf32>
    %cst_7 = arith.constant 0.000000e+00 : f32
    %12 = vector.broadcast %cst_7 : f32 to vector<8x256xf32>
    %13 = arith.maximumf %11, %12 : vector<8x256xf32>
    %14 = arith.truncf %13 : vector<8x256xf32> to vector<8x256xbf16>
    %c0_8 = arith.constant 0 : index
    %c0_9 = arith.constant 0 : index
    %15 = vector.load %arg4[%c0_8, %c0_9] : memref<8x256xbf16, #tpu.memory_space<vmem>>, vector<8x256xbf16>
    %cst_10 = arith.constant dense<0.000000e+00> : vector<8x8xf32>
    %16 = tpu.matmul %15, %14, %cst_10 {dimension_numbers = #tpu.dot_dimension_numbers<[1], [1], [0], [0], [0, 0, 1, 0], [], []>} : vector<8x256xbf16>, vector<8x256xbf16>, vector<8x8xf32> -> vector<8x8xf32>
    %c0_11 = arith.constant 0 : index
    %c0_12 = arith.constant 0 : index
    %17 = vector.load %arg5[%c0_11, %c0_12] : memref<8x8xf32, #tpu.memory_space<vmem>>, vector<8x8xf32>
    tpu.vector_store %arg5[%c0_11, %c0_12], %16 {strides = array<i32>} : memref<8x8xf32, #tpu.memory_space<vmem>>, vector<8x8xf32>,
    return
  }
  func.func @transform_0(%arg0: i32) -> (i32, i32) {
    %c0_i32 = arith.constant 0 : i32
    %c0_i32_0 = arith.constant 0 : i32
    return %arg0, %c0_i32 : i32, i32
  }
  func.func @transform_1(%arg0: i32) -> (i32, i32) {
    %c0_i32 = arith.constant 0 : i32
    %c0_i32_0 = arith.constant 0 : i32
    %c0_i32_1 = arith.constant 0 : i32
    return %c0_i32, %c0_i32_0 : i32, i32
  }
  func.func @transform_2(%arg0: i32) -> (i32, i32) {
    %c0_i32 = arith.constant 0 : i32
    %c0_i32_0 = arith.constant 0 : i32
    %c0_i32_1 = arith.constant 0 : i32
    return %c0_i32, %c0_i32_0 : i32, i32
  }
  func.func @transform_3(%arg0: i32) -> (i32, i32) {
    %c0_i32 = arith.constant 0 : i32
    %c0_i32_0 = arith.constant 0 : i32
    %c0_i32_1 = arith.constant 0 : i32
    return %c0_i32, %c0_i32_0 : i32, i32
  }
  func.func @transform_4(%arg0: i32) -> (i32, i32) {
    %c0_i32 = arith.constant 0 : i32
    %c0_i32_0 = arith.constant 0 : i32
    return %c0_i32, %arg0 : i32, i32
  }
}

</mosaic_0001>

<llo_original>
// kernel: tpu_custom_call.1
$region0: #{tpu_custom_call.1}
  #allocation0 [shape = 'u32[]', space=smem, size = 0x4, offset = 0x4, fixed_abs, tag = 'smem constant byte address 0x4 - core index']
  #allocation1 [shape = 'u32[144,128]{1,0:T(1,128)}', space=vmem, size = 0x12000, scoped, tag = 'internal scratch']
  %s0 = inlined_call_operand.hbm [shape: f32[8,11], index: 0, kind: input, shape index: {}]
  %s1 = inlined_call_operand.hbm [shape: bf16[11,768], index: 1, kind: input, shape index: {}]
  %s2 = inlined_call_operand.hbm [shape: bf16[512,256], index: 2, kind: input, shape index: {}]
  %s3 = inlined_call_operand.vmem [shape: bf16[8,256], index: 3, kind: input, shape index: {}]
  %s4 = inlined_call_operand.hbm [shape: f32[8,8], index: 4, kind: output, shape index: {}]
  %s5 = sld [smem:[#allocation0]]
  $region38: #{tpu_custom_call.1} parent=0
    _
  %s7 = ssub.s32 1, %s5
  %s8 = scalar_select 0, %s7, %s5
  $region1: #{tpu_custom_call.1} parent=0
    #allocation2 [shape = 'u8[4096]{0}', space=vmem, size = 0x1000, scoped, tag = 'input window, operand 0, single buffered']
    #allocation3 [shape = 's32[1]{0}', space=sflag, size = 0x4, scoped, tag = 'scoped memory for tpu_custom_call.1']
    #allocation4 [shape = 's32[1]{0}', space=sflag, size = 0x4, scoped, tag = 'scoped memory for tpu_custom_call.1']
    #allocation5 [shape = 'u8[24576]{0}', space=vmem, size = 0x6000, scoped, tag = 'input window, operand 1, single buffered']
    #allocation6 [shape = 's32[1]{0}', space=sflag, size = 0x4, scoped, tag = 'scoped memory for tpu_custom_call.1']
    #allocation7 [shape = 'u8[262144]{0}', space=vmem, size = 0x40000, scoped, tag = 'input window, operand 2, single buffered']
    #allocation8 [shape = 'u8[4096]{0}', space=vmem, size = 0x1000, scoped, tag = 'output window, operand 0, single buffered']
    %9 = vsyncpa [#allocation3], 0
    %10 = vsyncpa [#allocation6], 0
    %11 = vsyncpa [#allocation4], 0
    // Predicated region
    $region2: #{tpu_custom_call.1} parent=1 // pred_check
      _
    $region3: #{tpu_custom_call.1} parent=1 // pred_check_branch
      %13 = sbr.rel (0) target = $region5
    $region4: #{tpu_custom_call.1} parent=1 // pred_region
      %s15 = ssub.s32 128, 128
      %16 = vsyncadd [#allocation3], %s15
      %s18 = sshll.u32 [#allocation2], 4
      %s19 = int_to_ptr.vmem [resolvable:$true] %s18
      %21 = dma.hbm_to_vmem [thread:$0]  %s0, 128, %s19, [#allocation3]
    $region5: #{tpu_custom_call.1} parent=1 // pred_fallthru
      _
    // Predicated region
    $region6: #{tpu_custom_call.1} parent=1 // pred_check
      _
    $region7: #{tpu_custom_call.1} parent=1 // pred_check_branch
      %23 = sbr.rel (0) target = $region9
    $region8: #{tpu_custom_call.1} parent=1 // pred_region
      %s25 = ssub.s32 768, 768
      %26 = vsyncadd [#allocation6], %s25
      %s27 = sshll.u32 [#allocation5], 4
      %s28 = int_to_ptr.vmem [resolvable:$true] %s27
      %33 = dma.hbm_to_vmem [thread:$0]  %s1, 768, %s28, [#allocation6], 384, 384, 24
    $region9: #{tpu_custom_call.1} parent=1 // pred_fallthru
      _
    // Predicated region
    $region10: #{tpu_custom_call.1} parent=1 // pred_check
      _
    $region11: #{tpu_custom_call.1} parent=1 // pred_check_branch
      %35 = sbr.rel (0) target = $region13
    $region12: #{tpu_custom_call.1} parent=1 // pred_region
      %s37 = ssub.s32 8192, 8192
      %38 = vsyncadd [#allocation6], %s37
      %s39 = sshll.u32 [#allocation7], 4
      %s40 = int_to_ptr.vmem [resolvable:$true] %s39
      %45 = dma.hbm_to_vmem [thread:$0]  %s2, 8192, %s40, [#allocation6], 128, 128, 8
    $region13: #{tpu_custom_call.1} parent=1 // pred_fallthru
      _
    // Predicated region
    $region14: #{tpu_custom_call.1} parent=1 // pred_check
      _
    $region15: #{tpu_custom_call.1} parent=1 // pred_check_branch
      %47 = sbr.rel (0) target = $region17
    $region16: #{tpu_custom_call.1} parent=1 // pred_region
      _
    $region17: #{tpu_custom_call.1} parent=1 // pred_fallthru
      _
    // Predicated region
    $region18: #{tpu_custom_call.1} parent=1 // pred_check
      _
    $region19: #{tpu_custom_call.1} parent=1 // pred_check_branch
      %49 = sbr.rel (0) target = $region21
    $region20: #{tpu_custom_call.1} parent=1 // pred_region
      %50 = dma.done [#allocation3], 128
    $region21: #{tpu_custom_call.1} parent=1 // pred_fallthru
      _
    // Predicated region
    $region22: #{tpu_custom_call.1} parent=1 // pred_check
      _
    $region23: #{tpu_custom_call.1} parent=1 // pred_check_branch
      %52 = sbr.rel (0) target = $region25
    $region24: #{tpu_custom_call.1} parent=1 // pred_region
      %53 = dma.done [#allocation6], 768
    $region25: #{tpu_custom_call.1} parent=1 // pred_fallthru
      _
    // Predicated region
    $region26: #{tpu_custom_call.1} parent=1 // pred_check
      _
    $region27: #{tpu_custom_call.1} parent=1 // pred_check_branch
      %55 = sbr.rel (0) target = $region29
    $region28: #{tpu_custom_call.1} parent=1 // pred_region
      %56 = dma.done [#allocation6], 8192
    $region29: #{tpu_custom_call.1} parent=1 // pred_fallthru
      _
    %v58 = vld [vmem:[#allocation2] sm:$0xff]
    %v59 = vpack.c.bf16 %v58, %v58
    %v60 = vld [vmem:[#allocation5] sm:$0xff]
    %v61 = vld [vmem:[#allocation5 + $0x8] sm:$0xff]
    %v62 = vld [vmem:[#allocation5 + $0x10] sm:$0xff]
    %v63 = vld [vmem:[#allocation5 + $0x18] sm:$0x33]
    %v64 = vld [vmem:[#allocation5 + $0x20] sm:$0x33]
    %v65 = vld [vmem:[#allocation5 + $0x28] sm:$0x33]
    %v72 = vunpack.c.l.b16 %v60
    %v73 = vunpack.c.h.b16 %v60
    %v74 = vunpack.c.l.b16 %v61
    %v75 = vunpack.c.h.b16 %v61
    %v76 = vunpack.c.l.b16 %v62
    %v77 = vunpack.c.h.b16 %v62
    %v78 = vunpack.c.l.b16 %v63
    %v79 = vunpack.c.h.b16 %v63
    %v80 = vunpack.c.l.b16 %v64
    %v81 = vunpack.c.h.b16 %v64
    %v82 = vunpack.c.l.b16 %v65
    %v83 = vunpack.c.h.b16 %v65
    %v84 = vpack.c.b16 %v78, %v72
    %v85 = vpack.c.b16 %v79, %v73
    %v86 = vpack.c.b16 %v80, %v74
    %v87 = vpack.c.b16 %v81, %v75
    %v88 = vpack.c.b16 %v82, %v76
    %v89 = vpack.c.b16 %v83, %v77
    %vm90 = vcmask 89088
    %v92 = vsel %vm90, %v59, 0
    %vm94 = vcmask 1044480
    %vm95 = vcmask 1045504
    %v96 = vsel %vm94, 4294967295, 65535
    %v97 = vsel %vm95, %v96, 0
    %v99 = vand.u32 %v84, %v97
    %v102 = vand.u32 %v85, %v97
    %v105 = vand.u32 %v86, %v97
    %v108 = vand.u32 %v87, %v97
    %v111 = vand.u32 %v88, %v97
    %v114 = vand.u32 %v89, %v97
    %116 = vmatprep.subr.bf16.mxu0 %v102
    %117 = vmatpush1.bf16.msra.mxu0 %v99
    %118 = vmatprep.subr.bf16.mxu0 0
    %119 = vmatpush1.bf16.msra.mxu0 0
    %120 = vmatprep.subr.bf16.mxu0 0
    %121 = vmatpush1.bf16.msra.mxu0 0
    %122 = vmatprep.subr.bf16.mxu0 0
    %123 = vmatpush1.bf16.msra.mxu0 0
    %124 = vmatprep.subr.bf16.mxu0 0
    %125 = vmatpush1.bf16.msra.mxu0 0
    %126 = vmatprep.subr.bf16.mxu0 0
    %127 = vmatpush1.bf16.msra.mxu0 0
    %128 = vmatprep.subr.bf16.mxu0 0
    %129 = vmatpush1.bf16.msra.mxu0 0
    %130 = vmatprep.subr.bf16.mxu0 0
    %131 = vmatpush1.bf16.msra.mxu0 0
    %132 = vmatprep.subr.bf16.mxu0 0
    %133 = vmatpush1.bf16.msra.mxu0 0
    %134 = vmatprep.subr.bf16.mxu0 0
    %135 = vmatpush1.bf16.msra.mxu0 0
    %136 = vmatprep.subr.bf16.mxu0 0
    %137 = vmatpush1.bf16.msra.mxu0 0
    %138 = vmatprep.subr.bf16.mxu0 0
    %139 = vmatpush1.bf16.msra.mxu0 0
    %140 = vmatprep.subr.bf16.mxu0 0
    %141 = vmatpush1.bf16.msra.mxu0 0
    %142 = vmatprep.subr.bf16.mxu0 0
    %143 = vmatpush1.bf16.msra.mxu0 0
    %144 = vmatprep.subr.bf16.mxu0 0
    %145 = vmatpush1.bf16.msra.mxu0 0
    %146 = vmatprep.subr.bf16.mxu0 0
    %147 = vmatpush1.bf16.msra.mxu0 0
    %148 = vmatprep.mubr.bf16.mxu0 0
    %149 = vmatmul.mubr.bf16.gmra.mrb[0].mxu0 %v92
    %v150 = vpop.f32.mrb[0].mxu0
    %v151 = vadd.f32 0.0, %v150
    %v152 = vpop.f32.mrb[0].mxu0
    %v153 = vadd.f32 0.0, %v152
    %v154 = vpop.f32.mrb[0].mxu0
    %v155 = vpop.f32.mrb[0].mxu0
    %156 = vdwg.mxu0
    %157 = vmatprep.subr.bf16.mxu0 %v108
    %158 = vmatpush1.bf16.msra.mxu0 %v105
    %159 = vmatprep.subr.bf16.mxu0 0
    %160 = vmatpush1.bf16.msra.mxu0 0
    %161 = vmatprep.subr.bf16.mxu0 0
    %162 = vmatpush1.bf16.msra.mxu0 0
    %163 = vmatprep.subr.bf16.mxu0 0
    %164 = vmatpush1.bf16.msra.mxu0 0
    %165 = vmatprep.subr.bf16.mxu0 0
    %166 = vmatpush1.bf16.msra.mxu0 0
    %167 = vmatprep.subr.bf16.mxu0 0
    %168 = vmatpush1.bf16.msra.mxu0 0
    %169 = vmatprep.subr.bf16.mxu0 0
    %170 = vmatpush1.bf16.msra.mxu0 0
    %171 = vmatprep.subr.bf16.mxu0 0
    %172 = vmatpush1.bf16.msra.mxu0 0
    %173 = vmatprep.subr.bf16.mxu0 0
    %174 = vmatpush1.bf16.msra.mxu0 0
    %175 = vmatprep.subr.bf16.mxu0 0
    %176 = vmatpush1.bf16.msra.mxu0 0
    %177 = vmatprep.subr.bf16.mxu0 0
    %178 = vmatpush1.bf16.msra.mxu0 0
    %179 = vmatprep.subr.bf16.mxu0 0
    %180 = vmatpush1.bf16.msra.mxu0 0
    %181 = vmatprep.subr.bf16.mxu0 0
    %182 = vmatpush1.bf16.msra.mxu0 0
    %183 = vmatprep.subr.bf16.mxu0 0
    %184 = vmatpush1.bf16.msra.mxu0 0
    %185 = vmatprep.subr.bf16.mxu0 0
    %186 = vmatpush1.bf16.msra.mxu0 0
    %187 = vmatprep.subr.bf16.mxu0 0
    %188 = vmatpush1.bf16.msra.mxu0 0
    %189 = vmatprep.mubr.bf16.mxu0 0
    %190 = vmatmul.mubr.bf16.gmra.mrb[0].mxu0 %v92
    %v191 = vpop.f32.mrb[0].mxu0
    %v192 = vadd.f32 0.0, %v191
    %v193 = vpop.f32.mrb[0].mxu0
    %v194 = vadd.f32 0.0, %v193
    %v195 = vpop.f32.mrb[0].mxu0
    %v196 = vpop.f32.mrb[0].mxu0
    %197 = vdwg.mxu0
    %198 = vmatprep.subr.bf16.mxu0 %v114
    %199 = vmatpush1.bf16.msra.mxu0 %v111
    %200 = vmatprep.subr.bf16.mxu0 0
    %201 = vmatpush1.bf16.msra.mxu0 0
    %202 = vmatprep.subr.bf16.mxu0 0
    %203 = vmatpush1.bf16.msra.mxu0 0
    %204 = vmatprep.subr.bf16.mxu0 0
    %205 = vmatpush1.bf16.msra.mxu0 0
    %206 = vmatprep.subr.bf16.mxu0 0
    %207 = vmatpush1.bf16.msra.mxu0 0
    %208 = vmatprep.subr.bf16.mxu0 0
    %209 = vmatpush1.bf16.msra.mxu0 0
    %210 = vmatprep.subr.bf16.mxu0 0
    %211 = vmatpush1.bf16.msra.mxu0 0
    %212 = vmatprep.subr.bf16.mxu0 0
    %213 = vmatpush1.bf16.msra.mxu0 0
    %214 = vmatprep.subr.bf16.mxu0 0
    %215 = vmatpush1.bf16.msra.mxu0 0
    %216 = vmatprep.subr.bf16.mxu0 0
    %217 = vmatpush1.bf16.msra.mxu0 0
    %218 = vmatprep.subr.bf16.mxu0 0
    %219 = vmatpush1.bf16.msra.mxu0 0
    %220 = vmatprep.subr.bf16.mxu0 0
    %221 = vmatpush1.bf16.msra.mxu0 0
    %222 = vmatprep.subr.bf16.mxu0 0
    %223 = vmatpush1.bf16.msra.mxu0 0
    %224 = vmatprep.subr.bf16.mxu0 0
    %225 = vmatpush1.bf16.msra.mxu0 0
    %226 = vmatprep.subr.bf16.mxu0 0
    %227 = vmatpush1.bf16.msra.mxu0 0
    %228 = vmatprep.subr.bf16.mxu0 0
    %229 = vmatpush1.bf16.msra.mxu0 0
    %230 = vmatprep.mubr.bf16.mxu0 0
    %231 = vmatmul.mubr.bf16.gmra.mrb[0].mxu0 %v92
    %v232 = vpop.f32.mrb[0].mxu0
    %v233 = vadd.f32 0.0, %v232
    %v234 = vpop.f32.mrb[0].mxu0
    %v235 = vadd.f32 0.0, %v234
    %v236 = vpop.f32.mrb[0].mxu0
    %v237 = vpop.f32.mrb[0].mxu0
    %238 = vdwg.mxu0
    %v239 = vmax.f32 %v151, 0.0
    %v240 = vmax.f32 %v153, 0.0
    %v241 = vmax.f32 %v192, 0.0
    %v242 = vmax.f32 %v194, 0.0
    %v243 = vpack.c.bf16 %v239, %v239
    %v244 = vpack.c.bf16 %v240, %v240
    %v245 = vpack.c.bf16 %v241, %v241
    %v246 = vpack.c.bf16 %v242, %v242
    %v247 = vld [vmem:[#allocation7] sm:$0xff]
    %v248 = vld [vmem:[#allocation7 + $0x8] sm:$0xff]
    %v249 = vld [vmem:[#allocation7 + $0x10] sm:$0xff]
    %v250 = vld [vmem:[#allocation7 + $0x18] sm:$0xff]
    %v251 = vld [vmem:[#allocation7 + $0x20] sm:$0xff]
    %v252 = vld [vmem:[#allocation7 + $0x28] sm:$0xff]
    %v253 = vld [vmem:[#allocation7 + $0x30] sm:$0xff]
    %v254 = vld [vmem:[#allocation7 + $0x38] sm:$0xff]
    %v255 = vld [vmem:[#allocation7 + $0x40] sm:$0xff]
    %v256 = vld [vmem:[#allocation7 + $0x48] sm:$0xff]
    %v257 = vld [vmem:[#allocation7 + $0x50] sm:$0xff]
    %v258 = vld [vmem:[#allocation7 + $0x58] sm:$0xff]
    %v259 = vld [vmem:[#allocation7 + $0x60] sm:$0xff]
    %v260 = vld [vmem:[#allocation7 + $0x68] sm:$0xff]
    %v261 = vld [vmem:[#allocation7 + $0x70] sm:$0xff]
    %v262 = vld [vmem:[#allocation7 + $0x78] sm:$0xff]
    %v263 = vld [vmem:[#allocation7 + $0x80] sm:$0xff]
    %v264 = vld [vmem:[#allocation7 + $0x88] sm:$0xff]
    %v265 = vld [vmem:[#allocation7 + $0x90] sm:$0xff]
    %v266 = vld [vmem:[#allocation7 + $0x98] sm:$0xff]
    %v267 = vld [vmem:[#allocation7 + $0xa0] sm:$0xff]
    %v268 = vld [vmem:[#allocation7 + $0xa8] sm:$0xff]
    %v269 = vld [vmem:[#allocation7 + $0xb0] sm:$0xff]
    %v270 = vld [vmem:[#allocation7 + $0xb8] sm:$0xff]
    %v271 = vld [vmem:[#allocation7 + $0xc0] sm:$0xff]
    %v272 = vld [vmem:[#allocation7 + $0xc8] sm:$0xff]
    %v273 = vld [vmem:[#allocation7 + $0xd0] sm:$0xff]
    %v274 = vld [vmem:[#allocation7 + $0xd8] sm:$0xff]
    %v275 = vld [vmem:[#allocation7 + $0xe0] sm:$0xff]
    %v276 = vld [vmem:[#allocation7 + $0xe8] sm:$0xff]
    %v277 = vld [vmem:[#allocation7 + $0xf0] sm:$0xff]
    %v278 = vld [vmem:[#allocation7 + $0xf8] sm:$0xff]
    %v279 = vld [vmem:[#allocation7 + $0x100] sm:$0xff]
    %v280 = vld [vmem:[#allocation7 + $0x108] sm:$0xff]
    %v281 = vld [vmem:[#allocation7 + $0x110] sm:$0xff]
    %v282 = vld [vmem:[#allocation7 + $0x118] sm:$0xff]
    %v283 = vld [vmem:[#allocation7 + $0x120] sm:$0xff]
    %v284 = vld [vmem:[#allocation7 + $0x128] sm:$0xff]
    %v285 = vld [vmem:[#allocation7 + $0x130] sm:$0xff]
    %v286 = vld [vmem:[#allocation7 + $0x138] sm:$0xff]
    %v287 = vld [vmem:[#allocation7 + $0x140] sm:$0xff]
    %v288 = vld [vmem:[#allocation7 + $0x148] sm:$0xff]
    %v289 = vld [vmem:[#allocation7 + $0x150] sm:$0xff]
    %v290 = vld [vmem:[#allocation7 + $0x158] sm:$0xff]
    %v291 = vld [vmem:[#allocation7 + $0x160] sm:$0xff]
    %v292 = vld [vmem:[#allocation7 + $0x168] sm:$0xff]
    %v293 = vld [vmem:[#allocation7 + $0x170] sm:$0xff]
    %v294 = vld [vmem:[#allocation7 + $0x178] sm:$0xff]
    %v295 = vld [vmem:[#allocation7 + $0x180] sm:$0xff]
    %v296 = vld [vmem:[#allocation7 + $0x188] sm:$0xff]
    %v297 = vld [vmem:[#allocation7 + $0x190] sm:$0xff]
    %v298 = vld [vmem:[#allocation7 + $0x198] sm:$0xff]
    %v299 = vld [vmem:[#allocation7 + $0x1a0] sm:$0xff]
    %v300 = vld [vmem:[#allocation7 + $0x1a8] sm:$0xff]
    %v301 = vld [vmem:[#allocation7 + $0x1b0] sm:$0xff]
    %v302 = vld [vmem:[#allocation7 + $0x1b8] sm:$0xff]
    %v303 = vld [vmem:[#allocation7 + $0x1c0] sm:$0xff]
    %v304 = vld [vmem:[#allocation7 + $0x1c8] sm:$0xff]
    %v305 = vld [vmem:[#allocation7 + $0x1d0] sm:$0xff]
    %v306 = vld [vmem:[#allocation7 + $0x1d8] sm:$0xff]
    %v307 = vld [vmem:[#allocation7 + $0x1e0] sm:$0xff]
    %v308 = vld [vmem:[#allocation7 + $0x1e8] sm:$0xff]
    %v309 = vld [vmem:[#allocation7 + $0x1f0] sm:$0xff]
    %v310 = vld [vmem:[#allocation7 + $0x1f8] sm:$0xff]
    %v375 = vunpack.c.l.b16 %v247
    %v376 = vunpack.c.h.b16 %v247
    %v377 = vunpack.c.l.b16 %v248
    %v378 = vunpack.c.h.b16 %v248
    %v379 = vunpack.c.l.b16 %v249
    %v380 = vunpack.c.h.b16 %v249
    %v381 = vunpack.c.l.b16 %v250
    %v382 = vunpack.c.h.b16 %v250
    %v383 = vunpack.c.l.b16 %v251
    %v384 = vunpack.c.h.b16 %v251
    %v385 = vunpack.c.l.b16 %v252
    %v386 = vunpack.c.h.b16 %v252
    %v387 = vunpack.c.l.b16 %v253
    %v388 = vunpack.c.h.b16 %v253
    %v389 = vunpack.c.l.b16 %v254
    %v390 = vunpack.c.h.b16 %v254
    %v391 = vunpack.c.l.b16 %v255
    %v392 = vunpack.c.h.b16 %v255
    %v393 = vunpack.c.l.b16 %v256
    %v394 = vunpack.c.h.b16 %v256
    %v395 = vunpack.c.l.b16 %v257
    %v396 = vunpack.c.h.b16 %v257
    %v397 = vunpack.c.l.b16 %v258
    %v398 = vunpack.c.h.b16 %v258
    %v399 = vunpack.c.l.b16 %v259
    %v400 = vunpack.c.h.b16 %v259
    %v401 = vunpack.c.l.b16 %v260
    %v402 = vunpack.c.h.b16 %v260
    %v403 = vunpack.c.l.b16 %v261
    %v404 = vunpack.c.h.b16 %v261
    %v405 = vunpack.c.l.b16 %v262
    %v406 = vunpack.c.h.b16 %v262
    %v407 = vunpack.c.l.b16 %v263
    %v408 = vunpack.c.h.b16 %v263
    %v409 = vunpack.c.l.b16 %v264
    %v410 = vunpack.c.h.b16 %v264
    %v411 = vunpack.c.l.b16 %v265
    %v412 = vunpack.c.h.b16 %v265
    %v413 = vunpack.c.l.b16 %v266
    %v414 = vunpack.c.h.b16 %v266
    %v415 = vunpack.c.l.b16 %v267
    %v416 = vunpack.c.h.b16 %v267
    %v417 = vunpack.c.l.b16 %v268
    %v418 = vunpack.c.h.b16 %v268
    %v419 = vunpack.c.l.b16 %v269
    %v420 = vunpack.c.h.b16 %v269
    %v421 = vunpack.c.l.b16 %v270
    %v422 = vunpack.c.h.b16 %v270
    %v423 = vunpack.c.l.b16 %v271
    %v424 = vunpack.c.h.b16 %v271
    %v425 = vunpack.c.l.b16 %v272
    %v426 = vunpack.c.h.b16 %v272
    %v427 = vunpack.c.l.b16 %v273
    %v428 = vunpack.c.h.b16 %v273
    %v429 = vunpack.c.l.b16 %v274
    %v430 = vunpack.c.h.b16 %v274
    %v431 = vunpack.c.l.b16 %v275
    %v432 = vunpack.c.h.b16 %v275
    %v433 = vunpack.c.l.b16 %v276
    %v434 = vunpack.c.h.b16 %v276
    %v435 = vunpack.c.l.b16 %v277
    %v436 = vunpack.c.h.b16 %v277
    %v437 = vunpack.c.l.b16 %v278
    %v438 = vunpack.c.h.b16 %v278
    %v439 = vunpack.c.l.b16 %v279
    %v440 = vunpack.c.h.b16 %v279
    %v441 = vunpack.c.l.b16 %v280
    %v442 = vunpack.c.h.b16 %v280
    %v443 = vunpack.c.l.b16 %v281
    %v444 = vunpack.c.h.b16 %v281
    %v445 = vunpack.c.l.b16 %v282
    %v446 = vunpack.c.h.b16 %v282
    %v447 = vunpack.c.l.b16 %v283
    %v448 = vunpack.c.h.b16 %v283
    %v449 = vunpack.c.l.b16 %v284
    %v450 = vunpack.c.h.b16 %v284
    %v451 = vunpack.c.l.b16 %v285
    %v452 = vunpack.c.h.b16 %v285
    %v453 = vunpack.c.l.b16 %v286
    %v454 = vunpack.c.h.b16 %v286
    %v455 = vunpack.c.l.b16 %v287
    %v456 = vunpack.c.h.b16 %v287
    %v457 = vunpack.c.l.b16 %v288
    %v458 = vunpack.c.h.b16 %v288
    %v459 = vunpack.c.l.b16 %v289
    %v460 = vunpack.c.h.b16 %v289
    %v461 = vunpack.c.l.b16 %v290
    %v462 = vunpack.c.h.b16 %v290
    %v463 = vunpack.c.l.b16 %v291
    %v464 = vunpack.c.h.b16 %v291
    %v465 = vunpack.c.l.b16 %v292
    %v466 = vunpack.c.h.b16 %v292
    %v467 = vunpack.c.l.b16 %v293
    %v468 = vunpack.c.h.b16 %v293
    %v469 = vunpack.c.l.b16 %v294
    %v470 = vunpack.c.h.b16 %v294
    %v471 = vunpack.c.l.b16 %v295
    %v472 = vunpack.c.h.b16 %v295
    %v473 = vunpack.c.l.b16 %v296
    %v474 = vunpack.c.h.b16 %v296
    %v475 = vunpack.c.l.b16 %v297
    %v476 = vunpack.c.h.b16 %v297
    %v477 = vunpack.c.l.b16 %v298
    %v478 = vunpack.c.h.b16 %v298
    %v479 = vunpack.c.l.b16 %v299
    %v480 = vunpack.c.h.b16 %v299
    %v481 = vunpack.c.l.b16 %v300
    %v482 = vunpack.c.h.b16 %v300
    %v483 = vunpack.c.l.b16 %v301
    %v484 = vunpack.c.h.b16 %v301
    %v485 = vunpack.c.l.b16 %v302
    %v486 = vunpack.c.h.b16 %v302
    %v487 = vunpack.c.l.b16 %v303
    %v488 = vunpack.c.h.b16 %v303
    %v489 = vunpack.c.l.b16 %v304
    %v490 = vunpack.c.h.b16 %v304
    %v491 = vunpack.c.l.b16 %v305
    %v492 = vunpack.c.h.b16 %v305
    %v493 = vunpack.c.l.b16 %v306
    %v494 = vunpack.c.h.b16 %v306
    %v495 = vunpack.c.l.b16 %v307
    %v496 = vunpack.c.h.b16 %v307
    %v497 = vunpack.c.l.b16 %v308
    %v498 = vunpack.c.h.b16 %v308
    %v499 = vunpack.c.l.b16 %v309
    %v500 = vunpack.c.h.b16 %v309
    %v501 = vunpack.c.l.b16 %v310
    %v502 = vunpack.c.h.b16 %v310
    %v503 = vpack.c.b16 %v377, %v375
    %v504 = vpack.c.b16 %v378, %v376
    %v505 = vpack.c.b16 %v381, %v379
    %v506 = vpack.c.b16 %v382, %v380
    %v507 = vpack.c.b16 %v385, %v383
    %v508 = vpack.c.b16 %v386, %v384
    %v509 = vpack.c.b16 %v389, %v387
    %v510 = vpack.c.b16 %v390, %v388
    %v511 = vpack.c.b16 %v393, %v391
    %v512 = vpack.c.b16 %v394, %v392
    %v513 = vpack.c.b16 %v397, %v395
    %v514 = vpack.c.b16 %v398, %v396
    %v515 = vpack.c.b16 %v401, %v399
    %v516 = vpack.c.b16 %v402, %v400
    %v517 = vpack.c.b16 %v405, %v403
    %v518 = vpack.c.b16 %v406, %v404
    %v519 = vpack.c.b16 %v409, %v407
    %v520 = vpack.c.b16 %v410, %v408
    %v521 = vpack.c.b16 %v413, %v411
    %v522 = vpack.c.b16 %v414, %v412
    %v523 = vpack.c.b16 %v417, %v415
    %v524 = vpack.c.b16 %v418, %v416
    %v525 = vpack.c.b16 %v421, %v419
    %v526 = vpack.c.b16 %v422, %v420
    %v527 = vpack.c.b16 %v425, %v423
    %v528 = vpack.c.b16 %v426, %v424
    %v529 = vpack.c.b16 %v429, %v427
    %v530 = vpack.c.b16 %v430, %v428
    %v531 = vpack.c.b16 %v433, %v431
    %v532 = vpack.c.b16 %v434, %v432
    %v533 = vpack.c.b16 %v437, %v435
    %v534 = vpack.c.b16 %v438, %v436
    %v535 = vpack.c.b16 %v441, %v439
    %v536 = vpack.c.b16 %v442, %v440
    %v537 = vpack.c.b16 %v445, %v443
    %v538 = vpack.c.b16 %v446, %v444
    %v539 = vpack.c.b16 %v449, %v447
    %v540 = vpack.c.b16 %v450, %v448
    %v541 = vpack.c.b16 %v453, %v451
    %v542 = vpack.c.b16 %v454, %v452
    %v543 = vpack.c.b16 %v457, %v455
    %v544 = vpack.c.b16 %v458, %v456
    %v545 = vpack.c.b16 %v461, %v459
    %v546 = vpack.c.b16 %v462, %v460
    %v547 = vpack.c.b16 %v465, %v463
    %v548 = vpack.c.b16 %v466, %v464
    %v549 = vpack.c.b16 %v469, %v467
    %v550 = vpack.c.b16 %v470, %v468
    %v551 = vpack.c.b16 %v473, %v471
    %v552 = vpack.c.b16 %v474, %v472
    %v553 = vpack.c.b16 %v477, %v475
    %v554 = vpack.c.b16 %v478, %v476
    %v555 = vpack.c.b16 %v481, %v479
    %v556 = vpack.c.b16 %v482, %v480
    %v557 = vpack.c.b16 %v485, %v483
    %v558 = vpack.c.b16 %v486, %v484
    %v559 = vpack.c.b16 %v489, %v487
    %v560 = vpack.c.b16 %v490, %v488
    %v561 = vpack.c.b16 %v493, %v491
    %v562 = vpack.c.b16 %v494, %v492
    %v563 = vpack.c.b16 %v497, %v495
    %v564 = vpack.c.b16 %v498, %v496
    %v565 = vpack.c.b16 %v501, %v499
    %v566 = vpack.c.b16 %v502, %v500
    %631 = vmatprep.subr.bf16.mxu0 %v504
    %632 = vmatpush1.bf16.msra.mxu0 %v503
    %633 = vmatprep.subr.bf16.mxu0 %v506
    %634 = vmatpush1.bf16.msra.mxu0 %v505
    %635 = vmatprep.subr.bf16.mxu0 %v508
    %636 = vmatpush1.bf16.msra.mxu0 %v507
    %637 = vmatprep.subr.bf16.mxu0 %v510
    %638 = vmatpush1.bf16.msra.mxu0 %v509
    %639 = vmatprep.subr.bf16.mxu0 %v512
    %640 = vmatpush1.bf16.msra.mxu0 %v511
    %641 = vmatprep.subr.bf16.mxu0 %v514
    %642 = vmatpush1.bf16.msra.mxu0 %v513
    %643 = vmatprep.subr.bf16.mxu0 %v516
    %644 = vmatpush1.bf16.msra.mxu0 %v515
    %645 = vmatprep.subr.bf16.mxu0 %v518
    %646 = vmatpush1.bf16.msra.mxu0 %v517
    %647 = vmatprep.subr.bf16.mxu0 %v520
    %648 = vmatpush1.bf16.msra.mxu0 %v519
    %649 = vmatprep.subr.bf16.mxu0 %v522
    %650 = vmatpush1.bf16.msra.mxu0 %v521
    %651 = vmatprep.subr.bf16.mxu0 %v524
    %652 = vmatpush1.bf16.msra.mxu0 %v523
    %653 = vmatprep.subr.bf16.mxu0 %v526
    %654 = vmatpush1.bf16.msra.mxu0 %v525
    %655 = vmatprep.subr.bf16.mxu0 %v528
    %656 = vmatpush1.bf16.msra.mxu0 %v527
    %657 = vmatprep.subr.bf16.mxu0 %v530
    %658 = vmatpush1.bf16.msra.mxu0 %v529
    %659 = vmatprep.subr.bf16.mxu0 %v532
    %660 = vmatpush1.bf16.msra.mxu0 %v531
    %661 = vmatprep.subr.bf16.mxu0 %v534
    %662 = vmatpush1.bf16.msra.mxu0 %v533
    %663 = vmatprep.mubr.bf16.mxu0 %v244
    %664 = vmatmul.mubr.bf16.gmra.mrb[0].mxu0 %v243
    %v665 = vpop.f32.mrb[0].mxu0
    %v666 = vadd.f32 %v233, %v665
    %v667 = vpop.f32.mrb[0].mxu0
    %v668 = vadd.f32 %v235, %v667
    %v669 = vpop.f32.mrb[0].mxu0
    %v670 = vpop.f32.mrb[0].mxu0
    %671 = vdwg.mxu0
    %672 = vmatprep.subr.bf16.mxu0 %v536
    %673 = vmatpush1.bf16.msra.mxu0 %v535
    %674 = vmatprep.subr.bf16.mxu0 %v538
    %675 = vmatpush1.bf16.msra.mxu0 %v537
    %676 = vmatprep.subr.bf16.mxu0 %v540
    %677 = vmatpush1.bf16.msra.mxu0 %v539
    %678 = vmatprep.subr.bf16.mxu0 %v542
    %679 = vmatpush1.bf16.msra.mxu0 %v541
    %680 = vmatprep.subr.bf16.mxu0 %v544
    %681 = vmatpush1.bf16.msra.mxu0 %v543
    %682 = vmatprep.subr.bf16.mxu0 %v546
    %683 = vmatpush1.bf16.msra.mxu0 %v545
    %684 = vmatprep.subr.bf16.mxu0 %v548
    %685 = vmatpush1.bf16.msra.mxu0 %v547
    %686 = vmatprep.subr.bf16.mxu0 %v550
    %687 = vmatpush1.bf16.msra.mxu0 %v549
    %688 = vmatprep.subr.bf16.mxu0 %v552
    %689 = vmatpush1.bf16.msra.mxu0 %v551
    %690 = vmatprep.subr.bf16.mxu0 %v554
    %691 = vmatpush1.bf16.msra.mxu0 %v553
    %692 = vmatprep.subr.bf16.mxu0 %v556
    %693 = vmatpush1.bf16.msra.mxu0 %v555
    %694 = vmatprep.subr.bf16.mxu0 %v558
    %695 = vmatpush1.bf16.msra.mxu0 %v557
    %696 = vmatprep.subr.bf16.mxu0 %v560
    %697 = vmatpush1.bf16.msra.mxu0 %v559
    %698 = vmatprep.subr.bf16.mxu0 %v562
    %699 = vmatpush1.bf16.msra.mxu0 %v561
    %700 = vmatprep.subr.bf16.mxu0 %v564
    %701 = vmatpush1.bf16.msra.mxu0 %v563
    %702 = vmatprep.subr.bf16.mxu0 %v566
    %703 = vmatpush1.bf16.msra.mxu0 %v565
    %704 = vmatprep.mubr.bf16.mxu0 %v246
    %705 = vmatmul.mubr.bf16.gmra.mrb[0].mxu0 %v245
    %v706 = vpop.f32.mrb[0].mxu0
    %v707 = vadd.f32 %v666, %v706
    %v708 = vpop.f32.mrb[0].mxu0
    %v709 = vadd.f32 %v668, %v708
    %v710 = vpop.f32.mrb[0].mxu0
    %v711 = vpop.f32.mrb[0].mxu0
    %712 = vdwg.mxu0
    %v713 = vmax.f32 %v707, 0.0
    %v714 = vmax.f32 %v709, 0.0
    %v715 = vpack.c.bf16 %v713, %v713
    %v716 = vpack.c.bf16 %v714, %v714
    %v717 = vld [vmem:[%s3] sm:$0xff]
    %v719 = vunpack.c.l.b16 %v717
    %v720 = vunpack.c.h.b16 %v717
    %v721 = vpack.c.b16 %v719, %v719
    %v722 = vpack.c.b16 %v720, %v720
    %725 = vmatprep.subr.bf16.mxu0 %v716
    %726 = vmatpush1.bf16.xpose.msra.mxu0 %v715
    %727 = vmatprep.subr.bf16.mxu0 0
    %728 = vmatpush1.bf16.xpose.msra.mxu0 0
    %729 = vmatprep.subr.bf16.mxu0 0
    %730 = vmatpush1.bf16.xpose.msra.mxu0 0
    %731 = vmatprep.subr.bf16.mxu0 0
    %732 = vmatpush1.bf16.xpose.msra.mxu0 0
    %733 = vmatprep.subr.bf16.mxu0 0
    %734 = vmatpush1.bf16.xpose.msra.mxu0 0
    %735 = vmatprep.subr.bf16.mxu0 0
    %736 = vmatpush1.bf16.xpose.msra.mxu0 0
    %737 = vmatprep.subr.bf16.mxu0 0
    %738 = vmatpush1.bf16.xpose.msra.mxu0 0
    %739 = vmatprep.subr.bf16.mxu0 0
    %740 = vmatpush1.bf16.xpose.msra.mxu0 0
    %741 = vmatprep.subr.bf16.mxu0 0
    %742 = vmatpush1.bf16.xpose.msra.mxu0 0
    %743 = vmatprep.subr.bf16.mxu0 0
    %744 = vmatpush1.bf16.xpose.msra.mxu0 0
    %745 = vmatprep.subr.bf16.mxu0 0
    %746 = vmatpush1.bf16.xpose.msra.mxu0 0
    %747 = vmatprep.subr.bf16.mxu0 0
    %748 = vmatpush1.bf16.xpose.msra.mxu0 0
    %749 = vmatprep.subr.bf16.mxu0 0
    %750 = vmatpush1.bf16.xpose.msra.mxu0 0
    %751 = vmatprep.subr.bf16.mxu0 0
    %752 = vmatpush1.bf16.xpose.msra.mxu0 0
    %753 = vmatprep.subr.bf16.mxu0 0
    %754 = vmatpush1.bf16.xpose.msra.mxu0 0
    %755 = vmatprep.subr.bf16.mxu0 0
    %756 = vmatpush1.bf16.xpose.msra.mxu0 0
    %757 = vmatprep.mubr.bf16.mxu0 %v722
    %758 = vmatmul.mubr.bf16.gmra.mrb[0].mxu0 %v721
    %v759 = vpop.f32.mrb[0].mxu0
    %v760 = vadd.f32 0.0, %v759
    %v761 = vpop.f32.mrb[0].mxu0
    %v762 = vpop.f32.mrb[0].mxu0
    %v763 = vpop.f32.mrb[0].mxu0
    %764 = vdwg.mxu0
    %vm765 = vcmask 64512
    %766 = vst.msk [vmem:[#allocation8] sm:$0xff] %vm765, %v760
    // Predicated region
    $region30: #{tpu_custom_call.1} parent=1 // pred_check
      _
    $region31: #{tpu_custom_call.1} parent=1 // pred_check_branch
      %768 = sbr.rel (0) target = $region33
    $region32: #{tpu_custom_call.1} parent=1 // pred_region
      %s770 = ssub.s32 128, 128
      %771 = vsyncadd [#allocation4], %s770
      %s773 = sshll.u32 [#allocation8], 4
      %s774 = int_to_ptr.vmem [resolvable:$true] %s773
      %776 = dma.vmem_to_hbm [thread:$0]  %s774, 128, %s4, [#allocation4]
    $region33: #{tpu_custom_call.1} parent=1 // pred_fallthru
      _
    // Predicated region
    $region34: #{tpu_custom_call.1} parent=1 // pred_check
      _
    $region35: #{tpu_custom_call.1} parent=1 // pred_check_branch
      %778 = sbr.rel (0) target = $region37
    $region36: #{tpu_custom_call.1} parent=1 // pred_region
      %779 = dma.done [#allocation4], 128
    $region37: #{tpu_custom_call.1} parent=1 // pred_fallthru
      _
    %780 = vsyncpa [#allocation3], 1
    %781 = vsyncpa [#allocation6], 1
    %782 = vsyncpa [#allocation4], 1

</llo_original>
